<compile_context>
chip_gen: v7x
topology: tpu7x:2x2x1
jax: 0.10.0
libtpu: 0.0.40
codegen_flags: <defaults>
</compile_context>

<pallas_src>
import jax
import jax.numpy as jnp
from jax.experimental import pallas as pl
from jax.experimental.pallas import tpu as pltpu


def _round_up(n, m):
    return (n + m - 1) // m * m


# ---------------- Stage 1: y = x @ W.T + b  (computed once, lane-dense) ------

def _make_linear_kernel(mm_dtype):
    def kernel(x_ref, wt_ref, b_ref, y_ref):
        x = x_ref[...].astype(mm_dtype)        # bf16 fast path on the MXU
        w = wt_ref[...].astype(mm_dtype)
        y = jnp.dot(x, w, preferred_element_type=jnp.float32)
        y = y + b_ref[...]                     # (tm, f_pad) + (1, f_pad)
        y_ref[...] = y.astype(y_ref.dtype)
    return kernel


# ---------------- Stage 2: out = G @ y  (rows x reduction grid) --------------

def _make_prop_kernel(n, tk, y_rows, mm_dtype, y_resident, mask_k_tail,
                      acc_in_out):
    def kernel(g_ref, y_ref, o_ref, *scratch):
        acc_ref = o_ref if acc_in_out else scratch[0]
        k = pl.program_id(1)

        @pl.when(k == 0)
        def _init():
            acc_ref[...] = jnp.zeros_like(acc_ref)

        # Stream G in its HBM dtype; cast per tile (keeps HBM traffic at
        # 4 B/elem for f32 G, 2 B/elem if the caller supplies bf16 G).
        g = g_ref[...].astype(mm_dtype)
        if mask_k_tail:
            # Reduction-tail tile: zero columns >= n so padded / undefined
            # rows of y (which carry the bias) never contribute.
            col = k * tk + jax.lax.broadcasted_iota(jnp.int32, g.shape, 1)
            g = jnp.where(col < n, g, jnp.zeros_like(g))

        if y_resident:
            if tk == y_rows:                   # single reduction step
                y_blk = y_ref[...]
            else:                              # VMEM-resident y: slice per step
                start = k * tk
                if tk % 128 == 0:
                    start = pl.multiple_of(start, 128)
                elif tk % 8 == 0:
                    start = pl.multiple_of(start, 8)
                y_blk = y_ref[pl.ds(start, tk), :]
        else:
            y_blk = y_ref[...]

        acc_ref[...] += jnp.dot(g, y_blk, preferred_element_type=jnp.float32)

        if not acc_in_out:
            @pl.when(k == pl.num_programs(1) - 1)
            def _fin():
                o_ref[...] = acc_ref[...].astype(o_ref.dtype)
    return kernel


def hgnn_conv(x, G, W, b, *, use_bf16=True, tm_cap=None, tk_cap=None):
    """HGNN_conv forward: out = G @ (x @ W.T + b).

    x: (N, in_ft), G: (N, N) (f32 or bf16), W: (out_ft, in_ft), b: (out_ft,).
    Returns (N, out_ft) in x.dtype.
    """
    N, in_ft = x.shape
    out_ft = W.shape[0]
    out_dtype = x.dtype
    mm_dtype = jnp.bfloat16 if use_bf16 else jnp.float32
    mm_bytes = 2 if use_bf16 else 4

    f_pad = _round_up(out_ft, 128)             # lane-dense output features

    # --- Tile selection: big rectangular tiles, capped for v7x VMEM ---------
    tm_budget = (2 << 20) // (4 * f_pad)       # rows s.t. f32 acc <= 2 MiB
    auto_tm_cap = max(128, min(1024, (tm_budget // 128) * 128))
    tm_cap = auto_tm_cap if tm_cap is None else tm_cap
    tk_cap = 2048 if tk_cap is None else tk_cap
    tm = N if N <= tm_cap else tm_cap          # full dim allowed for small N
    tk = N if N <= tk_cap else tk_cap          # tk non-full => multiple of 128
    mask_k_tail = (N % tk) != 0

    # y gets round_up(N, tk) rows so in-kernel pl.ds slices stay in bounds;
    # the padded rows equal the bias and are zeroed via the G tail mask.
    y_rows = _round_up(N, tk)

    # --- Operand prep: NO padded/cast copy of G (streamed as-is) ------------
    x_p = x if y_rows == N else jnp.pad(x, ((0, y_rows - N), (0, 0)))
    wt = W.T
    wt_p = wt if f_pad == out_ft else jnp.pad(wt, ((0, 0), (0, f_pad - out_ft)))
    b_p = (b if f_pad == out_ft else jnp.pad(b, (0, f_pad - out_ft)))
    b_p = b_p.reshape(1, f_pad)

    # --- Stage 1: linear (tiny vs G@y; one shot, row-tiled) ------------------
    tm_lin = min(1024, y_rows)
    y = pl.pallas_call(
        _make_linear_kernel(mm_dtype),
        out_shape=jax.ShapeDtypeStruct((y_rows, f_pad), mm_dtype),
        grid_spec=pltpu.PrefetchScalarGridSpec(
            num_scalar_prefetch=0,
            grid=(pl.cdiv(y_rows, tm_lin),),
            in_specs=[
                pl.BlockSpec((tm_lin, in_ft), lambda i: (i, 0)),
                pl.BlockSpec((in_ft, f_pad), lambda i: (0, 0)),
                pl.BlockSpec((1, f_pad), lambda i: (0, 0)),
            ],
            out_specs=pl.BlockSpec((tm_lin, f_pad), lambda i: (i, 0)),
        ),
        compiler_params=pltpu.CompilerParams(
            dimension_semantics=("parallel",)),
    )(x_p, wt_p, b_p)

    # --- Stage 2: propagation -------------------------------------------------
    y_resident = y_rows * f_pad * mm_bytes <= (8 << 20)
    if y_resident:
        y_spec = pl.BlockSpec((y_rows, f_pad), lambda i, k: (0, 0))
    else:
        y_spec = pl.BlockSpec((tk, f_pad), lambda i, k: (k, 0))

    # f32 output: accumulate directly into the resident output block.
    acc_in_out = (out_dtype == jnp.float32)
    scratch = [] if acc_in_out else [pltpu.VMEM((tm, f_pad), jnp.float32)]

    n_row_tiles = pl.cdiv(N, tm)
    g_bytes = G.dtype.itemsize
    cost = pl.CostEstimate(
        flops=2 * N * N * f_pad,
        transcendentals=0,
        bytes_accessed=(N * N * g_bytes
                        + (y_rows * f_pad * mm_bytes if y_resident
                           else n_row_tiles * y_rows * f_pad * mm_bytes)
                        + N * f_pad * out_dtype.itemsize))

    out_full = pl.pallas_call(
        _make_prop_kernel(N, tk, y_rows, mm_dtype, y_resident, mask_k_tail,
                          acc_in_out),
        out_shape=jax.ShapeDtypeStruct((N, f_pad), out_dtype),
        grid_spec=pltpu.PrefetchScalarGridSpec(
            num_scalar_prefetch=0,
            grid=(n_row_tiles, pl.cdiv(N, tk)),
            in_specs=[pl.BlockSpec((tm, tk), lambda i, k: (i, k)), y_spec],
            out_specs=pl.BlockSpec((tm, f_pad), lambda i, k: (i, 0)),
            scratch_shapes=scratch,
        ),
        compiler_params=pltpu.CompilerParams(
            dimension_semantics=("parallel", "arbitrary"),
            vmem_limit_bytes=64 * 1024 * 1024),
        cost_estimate=cost,
    )(G, y)

    return out_full[:, :out_ft]


if __name__ == "__main__":
    key = jax.random.PRNGKey(0)

    # ---- Test 1: small shapes consistent with the module --------------------
    N, in_ft, out_ft = 16, 32, 8
    kx, kg, kw, kb = jax.random.split(key, 4)
    x = jax.random.normal(kx, (N, in_ft), dtype=jnp.float32)
    G = jax.random.normal(kg, (N, N), dtype=jnp.float32)
    bound = 1.0 / (in_ft ** 0.5)
    W = jax.random.uniform(kw, (out_ft, in_ft), minval=-bound, maxval=bound,
                           dtype=jnp.float32)
    b = jax.random.uniform(kb, (out_ft,), minval=-bound, maxval=bound,
                           dtype=jnp.float32)
    ref = G @ (x @ W.T + b)

    out = hgnn_conv(x, G, W, b, use_bf16=True)
    jax.block_until_ready(out)
    assert out.shape == (N, out_ft)
    assert jnp.allclose(out, ref, atol=5e-2, rtol=5e-2), "bf16 path mismatch"

    out32 = hgnn_conv(x, G, W, b, use_bf16=False)
    jax.block_until_ready(out32)
    assert jnp.allclose(out32, ref, atol=2e-2, rtol=2e-2), "f32 path mismatch"

    # ---- Test 2: non-dividing N with small tile caps to exercise the
    # masked reduction tail, partial row blocks, and resident-y slicing. ------
    N2 = 200
    kx2, kg2 = jax.random.split(kg, 2)
    x2 = jax.random.normal(kx2, (N2, in_ft), dtype=jnp.float32)
    G2 = jax.random.normal(kg2, (N2, N2), dtype=jnp.float32)
    ref2 = G2 @ (x2 @ W.T + b)

    out2 = hgnn_conv(x2, G2, W, b, use_bf16=True, tm_cap=128, tk_cap=128)
    jax.block_until_ready(out2)
    assert out2.shape == (N2, out_ft)
    assert jnp.allclose(out2, ref2, atol=2e-1, rtol=5e-2), "tail-mask mismatch"

    print("KERNEL_OK")
</pallas_src>

<mosaic_0001>
module attributes {stable_mosaic.version = 11 : i64} {
  func.func @kernel(%arg0: i32, %arg1: memref<16x32xf32, #tpu.memory_space<vmem>>, %arg2: memref<32x128xf32, #tpu.memory_space<vmem>>, %arg3: memref<1x128xf32, #tpu.memory_space<vmem>>, %arg4: memref<16x128xbf16, #tpu.memory_space<vmem>>) attributes {dimension_semantics = [#tpu.dimension_semantics<parallel>], iteration_bounds = array<i64: 1>, scalar_prefetch = 0 : i64, scratch_operands = 0 : i64, tpu.core_type = #tpu.core_type<tc>, window_params = [{transform_indices = @transform_0, window_bounds = array<i64: 16, 32>}, {pipeline_mode = #tpu.pipeline_mode<synchronous>, transform_indices = @transform_1, window_bounds = array<i64: 32, 128>}, {pipeline_mode = #tpu.pipeline_mode<synchronous>, transform_indices = @transform_2, window_bounds = array<i64: 1, 128>}, {transform_indices = @transform_3, window_bounds = array<i64: 16, 128>}]} {
    %c0 = arith.constant 0 : index
    %c0_0 = arith.constant 0 : index
    %0 = vector.load %arg1[%c0, %c0_0] : memref<16x32xf32, #tpu.memory_space<vmem>>, vector<16x32xf32>
    %1 = arith.truncf %0 : vector<16x32xf32> to vector<16x32xbf16>
    %c0_1 = arith.constant 0 : index
    %c0_2 = arith.constant 0 : index
    %2 = vector.load %arg2[%c0_1, %c0_2] : memref<32x128xf32, #tpu.memory_space<vmem>>, vector<32x128xf32>
    %3 = arith.truncf %2 : vector<32x128xf32> to vector<32x128xbf16>
    %cst = arith.constant dense<0.000000e+00> : vector<16x128xf32>
    %4 = tpu.matmul %1, %3, %cst {dimension_numbers = #tpu.dot_dimension_numbers<[1], [0], [0], [1], [0, 0, 1, 1], [], []>} : vector<16x32xbf16>, vector<32x128xbf16>, vector<16x128xf32> -> vector<16x128xf32>
    %c0_3 = arith.constant 0 : index
    %c0_4 = arith.constant 0 : index
    %5 = vector.load %arg3[%c0_3, %c0_4] : memref<1x128xf32, #tpu.memory_space<vmem>>, vector<1x128xf32>
    %6 = vector.broadcast %5 : vector<1x128xf32> to vector<16x128xf32>
    %7 = arith.addf %4, %6 : vector<16x128xf32>
    %8 = arith.truncf %7 : vector<16x128xf32> to vector<16x128xbf16>
    %c0_5 = arith.constant 0 : index
    %c0_6 = arith.constant 0 : index
    %9 = vector.load %arg4[%c0_5, %c0_6] : memref<16x128xbf16, #tpu.memory_space<vmem>>, vector<16x128xbf16>
    tpu.vector_store %arg4[%c0_5, %c0_6], %8 {strides = array<i32>} : memref<16x128xbf16, #tpu.memory_space<vmem>>, vector<16x128xbf16>,
    return
  }
  func.func @transform_0(%arg0: i32) -> (i32, i32) {
    %c0_i32 = arith.constant 0 : i32
    %c0_i32_0 = arith.constant 0 : i32
    return %arg0, %c0_i32 : i32, i32
  }
  func.func @transform_1(%arg0: i32) -> (i32, i32) {
    %c0_i32 = arith.constant 0 : i32
    %c0_i32_0 = arith.constant 0 : i32
    %c0_i32_1 = arith.constant 0 : i32
    return %c0_i32, %c0_i32_0 : i32, i32
  }
  func.func @transform_2(%arg0: i32) -> (i32, i32) {
    %c0_i32 = arith.constant 0 : i32
    %c0_i32_0 = arith.constant 0 : i32
    %c0_i32_1 = arith.constant 0 : i32
    return %c0_i32, %c0_i32_0 : i32, i32
  }
  func.func @transform_3(%arg0: i32) -> (i32, i32) {
    %c0_i32 = arith.constant 0 : i32
    %c0_i32_0 = arith.constant 0 : i32
    return %arg0, %c0_i32 : i32, i32
  }
}

</mosaic_0001>

<llo_original>
// kernel: tpu_custom_call.1
$region0: #{tpu_custom_call.1}
  #allocation0 [shape = 'u32[]', space=smem, size = 0x4, offset = 0x4, fixed_abs, tag = 'smem constant byte address 0x4 - core index']
  #allocation1 [shape = 'u32[144,128]{1,0:T(1,128)}', space=vmem, size = 0x12000, scoped, tag = 'internal scratch']
  %s0 = inlined_call_operand.hbm [shape: f32[16,32], index: 0, kind: input, shape index: {}]
  %s1 = inlined_call_operand.hbm [shape: f32[32,128], index: 1, kind: input, shape index: {}]
  %s2 = inlined_call_operand.vmem [shape: f32[1,128], index: 2, kind: input, shape index: {}]
  %s3 = inlined_call_operand.hbm [shape: bf16[16,128], index: 3, kind: output, shape index: {}]
  %s4 = sld [smem:[#allocation0]]
  $region30: #{tpu_custom_call.1} parent=0
    _
  %s6 = ssub.s32 1, %s4
  %s7 = scalar_select 0, %s6, %s4
  $region1: #{tpu_custom_call.1} parent=0
    #allocation2 [shape = 'u8[8192]{0}', space=vmem, size = 0x2000, scoped, tag = 'input window, operand 0, single buffered']
    #allocation3 [shape = 's32[1]{0}', space=sflag, size = 0x4, scoped, tag = 'scoped memory for tpu_custom_call.1']
    #allocation4 [shape = 's32[1]{0}', space=sflag, size = 0x4, scoped, tag = 'scoped memory for tpu_custom_call.1']
    #allocation5 [shape = 'u8[16384]{0}', space=vmem, size = 0x4000, scoped, tag = 'input window, operand 1, single buffered']
    #allocation6 [shape = 's32[1]{0}', space=sflag, size = 0x4, scoped, tag = 'scoped memory for tpu_custom_call.1']
    #allocation7 [shape = 'u8[4096]{0}', space=vmem, size = 0x1000, scoped, tag = 'output window, operand 0, single buffered']
    %8 = vsyncpa [#allocation3], 0
    %9 = vsyncpa [#allocation6], 0
    %10 = vsyncpa [#allocation4], 0
    // Predicated region
    $region2: #{tpu_custom_call.1} parent=1 // pred_check
      _
    $region3: #{tpu_custom_call.1} parent=1 // pred_check_branch
      %12 = sbr.rel (0) target = $region5
    $region4: #{tpu_custom_call.1} parent=1 // pred_region
      %s14 = ssub.s32 256, 256
      %15 = vsyncadd [#allocation3], %s14
      %s16 = sshll.u32 [#allocation2], 4
      %s17 = int_to_ptr.vmem [resolvable:$true] %s16
      %22 = dma.hbm_to_vmem [thread:$0]  %s0, 256, %s17, [#allocation3], 128, 128, 8
    $region5: #{tpu_custom_call.1} parent=1 // pred_fallthru
      _
    // Predicated region
    $region6: #{tpu_custom_call.1} parent=1 // pred_check
      _
    $region7: #{tpu_custom_call.1} parent=1 // pred_check_branch
      %24 = sbr.rel (0) target = $region9
    $region8: #{tpu_custom_call.1} parent=1 // pred_region
      %s26 = ssub.s32 512, 512
      %27 = vsyncadd [#allocation6], %s26
      %s28 = sshll.u32 [#allocation5], 4
      %s29 = int_to_ptr.vmem [resolvable:$true] %s28
      %34 = dma.hbm_to_vmem [thread:$0]  %s1, 512, %s29, [#allocation6], 128, 128, 8
    $region9: #{tpu_custom_call.1} parent=1 // pred_fallthru
      _
    // Predicated region
    $region10: #{tpu_custom_call.1} parent=1 // pred_check
      _
    $region11: #{tpu_custom_call.1} parent=1 // pred_check_branch
      %36 = sbr.rel (0) target = $region13
    $region12: #{tpu_custom_call.1} parent=1 // pred_region
      _
    $region13: #{tpu_custom_call.1} parent=1 // pred_fallthru
      _
    // Predicated region
    $region14: #{tpu_custom_call.1} parent=1 // pred_check
      _
    $region15: #{tpu_custom_call.1} parent=1 // pred_check_branch
      %38 = sbr.rel (0) target = $region17
    $region16: #{tpu_custom_call.1} parent=1 // pred_region
      %39 = dma.done [#allocation3], 256
    $region17: #{tpu_custom_call.1} parent=1 // pred_fallthru
      _
    // Predicated region
    $region18: #{tpu_custom_call.1} parent=1 // pred_check
      _
    $region19: #{tpu_custom_call.1} parent=1 // pred_check_branch
      %41 = sbr.rel (0) target = $region21
    $region20: #{tpu_custom_call.1} parent=1 // pred_region
      %42 = dma.done [#allocation6], 512
    $region21: #{tpu_custom_call.1} parent=1 // pred_fallthru
      _
    %v44 = vld [vmem:[#allocation2] sm:$0xff]
    %v45 = vld [vmem:[#allocation2 + $0x8] sm:$0xff]
    %v46 = vpack.c.bf16 %v45, %v44
    %v47 = vld [vmem:[#allocation5] sm:$0xff]
    %v48 = vld [vmem:[#allocation5 + $0x8] sm:$0xff]
    %v49 = vld [vmem:[#allocation5 + $0x10] sm:$0xff]
    %v50 = vld [vmem:[#allocation5 + $0x18] sm:$0xff]
    %v51 = vpack.c.bf16 %v48, %v47
    %v52 = vpack.c.bf16 %v50, %v49
    %v53 = vld [vmem:[%s2] sm:$0x1]
    %v55 = vlaneseq
    %v56 = vshrl.u32 %v55, 7
    %v57 = vsub.s32 0, %v56
    %v58 = vrot.slane %v53, %v57
    %vm60 = vcmask 261120
    %v62 = vsel %vm60, %v46, 0
    %64 = vmatprep.subr.bf16.mxu0 0
    %65 = vmatpush1.bf16.msra.mxu0 %v51
    %66 = vmatprep.subr.bf16.mxu0 0
    %67 = vmatpush1.bf16.msra.mxu0 %v52
    %68 = vmatprep.subr.bf16.mxu0 0
    %69 = vmatpush1.bf16.msra.mxu0 0
    %70 = vmatprep.subr.bf16.mxu0 0
    %71 = vmatpush1.bf16.msra.mxu0 0
    %72 = vmatprep.subr.bf16.mxu0 0
    %73 = vmatpush1.bf16.msra.mxu0 0
    %74 = vmatprep.subr.bf16.mxu0 0
    %75 = vmatpush1.bf16.msra.mxu0 0
    %76 = vmatprep.subr.bf16.mxu0 0
    %77 = vmatpush1.bf16.msra.mxu0 0
    %78 = vmatprep.subr.bf16.mxu0 0
    %79 = vmatpush1.bf16.msra.mxu0 0
    %80 = vmatprep.subr.bf16.mxu0 0
    %81 = vmatpush1.bf16.msra.mxu0 0
    %82 = vmatprep.subr.bf16.mxu0 0
    %83 = vmatpush1.bf16.msra.mxu0 0
    %84 = vmatprep.subr.bf16.mxu0 0
    %85 = vmatpush1.bf16.msra.mxu0 0
    %86 = vmatprep.subr.bf16.mxu0 0
    %87 = vmatpush1.bf16.msra.mxu0 0
    %88 = vmatprep.subr.bf16.mxu0 0
    %89 = vmatpush1.bf16.msra.mxu0 0
    %90 = vmatprep.subr.bf16.mxu0 0
    %91 = vmatpush1.bf16.msra.mxu0 0
    %92 = vmatprep.subr.bf16.mxu0 0
    %93 = vmatpush1.bf16.msra.mxu0 0
    %94 = vmatprep.subr.bf16.mxu0 0
    %95 = vmatpush1.bf16.msra.mxu0 0
    %96 = vmatprep.mubr.bf16.mxu0 0
    %97 = vmatmul.mubr.bf16.gmra.mrb[0].mxu0 %v62
    %v98 = vpop.f32.mrb[0].mxu0
    %v99 = vadd.f32 %v58, %v98
    %v100 = vpop.f32.mrb[0].mxu0
    %v101 = vpop.f32.mrb[0].mxu0
    %v102 = vadd.f32 %v58, %v101
    %v103 = vpop.f32.mrb[0].mxu0
    %104 = vdwg.mxu0
    %v105 = vpack.c.bf16 %v102, %v99
    %v107 = vunpack.c.l.b16 %v105
    %v108 = vunpack.c.h.b16 %v105
    %v109 = vpack.c.b16 %v107, %v107
    %v110 = vpack.c.b16 %v108, %v108
    %113 = vst [vmem:[#allocation7] sm:$0xf] %v109
    %114 = vst [vmem:[#allocation7 + $0x4] sm:$0xf] %v110
    // Predicated region
    $region22: #{tpu_custom_call.1} parent=1 // pred_check
      _
    $region23: #{tpu_custom_call.1} parent=1 // pred_check_branch
      %116 = sbr.rel (0) target = $region25
    $region24: #{tpu_custom_call.1} parent=1 // pred_region
      %s118 = ssub.s32 128, 128
      %119 = vsyncadd [#allocation4], %s118
      %s120 = sshll.u32 [#allocation7], 4
      %s121 = int_to_ptr.vmem [resolvable:$true] %s120
      %126 = dma.vmem_to_hbm [thread:$0]  %s121, 128, %s3, [#allocation4], 64, 64, 4
    $region25: #{tpu_custom_call.1} parent=1 // pred_fallthru
      _
    // Predicated region
    $region26: #{tpu_custom_call.1} parent=1 // pred_check
      _
    $region27: #{tpu_custom_call.1} parent=1 // pred_check_branch
      %128 = sbr.rel (0) target = $region29
    $region28: #{tpu_custom_call.1} parent=1 // pred_region
      %129 = dma.done [#allocation4], 128
    $region29: #{tpu_custom_call.1} parent=1 // pred_fallthru
      _
    %130 = vsyncpa [#allocation3], 1
    %131 = vsyncpa [#allocation6], 1
    %132 = vsyncpa [#allocation4], 1

</llo_original>
